<compile_context>
chip_gen: v5e
topology: v5e:2x2
jax: 0.10.0
libtpu: 0.0.40
codegen_flags: <defaults>
</compile_context>

<pallas_src>
import jax
import jax.numpy as jnp
from jax.experimental import pallas as pl
from jax.experimental.pallas import tpu as pltpu


def rope_kernel(x_ref, cs_ref, o_ref):
    # x_ref: (TH, TS, D) activation tile.  cs_ref: (TS, D) f32 packed table
    # tile, interleaved [c0, s0, c1, s1, ...] -- shared by all TH heads.
    x = x_ref[...].astype(jnp.float32)
    cs = cs_ref[...]
    d = x.shape[-1]

    # Pair swap of x: swap[2k] = x[2k+1], swap[2k+1] = x[2k].
    x_next = pltpu.roll(x, shift=d - 1, axis=x.ndim - 1)    # x[(i+1) % d]
    x_prev = pltpu.roll(x, shift=1, axis=x.ndim - 1)        # x[(i-1) % d]
    # Expand the packed [c, s] row into per-lane cos / signed-sin factors.
    cs_next = pltpu.roll(cs, shift=d - 1, axis=cs.ndim - 1)
    cs_prev = pltpu.roll(cs, shift=1, axis=cs.ndim - 1)

    lane = jax.lax.broadcasted_iota(jnp.int32, cs.shape, cs.ndim - 1)
    even = (lane & 1) == 0                                   # (TS, D); broadcasts over TH

    c_eff = jnp.where(even, cs, cs_prev)      # cos_k on both lanes of pair k
    s_eff = jnp.where(even, -cs_next, cs)     # -sin_k on even lane, +sin_k on odd
    x_swap = jnp.where(even, x_next, x_prev)

    # out[2k]   = cos_k*x[2k]   - sin_k*x[2k+1]
    # out[2k+1] = sin_k*x[2k]   + cos_k*x[2k+1]
    o_ref[...] = (x * c_eff + x_swap * s_eff).astype(o_ref.dtype)


def _vmem_capacity_bytes():
    try:
        return int(pltpu.get_tpu_info().vmem_capacity_bytes)
    except Exception:
        return 64 * 1024 * 1024   # v7x physical VMEM (smallest of v5e/v6e/v7x)


def _pick_tiles(H, S, D, x_itemsize, budget_bytes):
    """Largest (TH heads, TS seq) tile whose double-buffered working set fits."""
    def step_bytes(th, ts):
        x_blk = th * ts * D * x_itemsize        # x input block
        o_blk = th * ts * D * x_itemsize        # output block
        cs_blk = ts * D * 4                     # packed table block
        f32_tmp = 3 * th * ts * D * 4           # in-kernel f32 intermediates headroom
        return 2 * (x_blk + o_blk + cs_blk) + f32_tmp

    ts_opts = [t for t in (2048, 1024, 512, 256, 128, 64, 32, 16, 8) if t <= S] or [S]
    th_opts = [d for d in range(H, 0, -1) if H % d == 0]
    for ts in ts_opts:              # prefer the largest seq tile ...
        for th in th_opts:          # ... then as many heads as still fit
            if step_bytes(th, ts) <= budget_bytes:
                return th, ts
    return 1, ts_opts[-1]


def rope_forward(x, token_positions, *, theta, d_k, max_seq_len):
    B, H, S, D = x.shape
    assert D == d_k and d_k % 2 == 0

    token_positions = jnp.asarray(token_positions)
    if token_positions.ndim == 1:
        token_positions = jnp.broadcast_to(token_positions[None, :], (B, S))

    # Packed table row per position: [cos0, sin0, cos1, sin1, ...] (exact f32).
    inv_freq = 1.0 / theta ** (jnp.arange(0, d_k, 2, dtype=jnp.float32) / d_k)
    positions = jnp.arange(max_seq_len, dtype=jnp.float32)
    angles = positions[:, None] * inv_freq[None, :]                     # (L, D/2)
    cs_table = jnp.stack([jnp.cos(angles), jnp.sin(angles)], axis=-1)   # (L, D/2, 2)
    cs_table = cs_table.reshape(max_seq_len, d_k)                       # (L, D)

    # Position gather (== self.R[token_positions]); only (B,S,D) f32 of traffic.
    # TODO(synk): move this gather in-kernel (scalar-prefetched token_positions
    # + VMEM-resident table) to drop the extra HBM round-trip entirely.
    cs = cs_table[token_positions]                                      # (B, S, D) f32

    vmem_cap = _vmem_capacity_bytes()
    TH, TS = _pick_tiles(H, S, D, jnp.dtype(x.dtype).itemsize, vmem_cap // 4)

    # Pad S to a tile multiple so awkward lengths never force a huge block.
    S_pad = pl.cdiv(S, TS) * TS
    if S_pad != S:
        x_in = jnp.pad(x, ((0, 0), (0, 0), (0, S_pad - S), (0, 0)))
        cs_in = jnp.pad(cs, ((0, 0), (0, S_pad - S), (0, 0)))
    else:
        x_in, cs_in = x, cs

    grid = (B, S_pad // TS, H // TH)       # head axis innermost -> table reuse

    x_spec = pl.BlockSpec((None, TH, TS, D), lambda b, s, h: (b, h, s, 0))
    cs_spec = pl.BlockSpec((None, TS, D), lambda b, s, h: (b, s, 0))

    out = pl.pallas_call(
        rope_kernel,
        out_shape=jax.ShapeDtypeStruct((B, H, S_pad, D), x.dtype),
        grid=grid,
        in_specs=[x_spec, cs_spec],
        out_specs=x_spec,
        compiler_params=pltpu.CompilerParams(
            dimension_semantics=("parallel", "parallel", "arbitrary"),
            vmem_limit_bytes=vmem_cap // 2,
        ),
    )(x_in, cs_in)

    return out[:, :, :S, :] if S_pad != S else out


def rope_reference(x, token_positions, *, theta, d_k, max_seq_len):
    """Pure-JAX reference matching the torch module exactly."""
    inv_freq = 1.0 / theta ** (jnp.arange(0, d_k, 2, dtype=jnp.float32) / d_k)
    positions = jnp.arange(max_seq_len, dtype=jnp.float32)
    angles = positions[:, None] * inv_freq[None, :]
    cos = jnp.cos(angles)
    sin = jnp.sin(angles)
    R = jnp.stack([jnp.stack([cos, -sin], axis=-1),
                   jnp.stack([sin, cos], axis=-1)], axis=-2)            # (L, D/2, 2, 2)
    rot = R[token_positions]                                            # (B, S, D/2, 2, 2)
    B, H, S, D = x.shape
    x_split = x.reshape(B, H, S, D // 2, 2)
    out_pair = jnp.einsum('bskij,bhskj->bhski', rot, x_split)
    return out_pair.reshape(B, H, S, D)


if __name__ == "__main__":
    theta = 10000.0
    d_k = 128
    max_seq_len = 32
    B, H, S = 2, 4, 16

    key = jax.random.PRNGKey(0)
    kx, kp = jax.random.split(key)
    x = jax.random.normal(kx, (B, H, S, d_k), dtype=jnp.float32)
    token_positions = jax.random.randint(kp, (B, S), 0, max_seq_len, dtype=jnp.int32)

    out = rope_forward(x, token_positions, theta=theta, d_k=d_k,
                       max_seq_len=max_seq_len)
    out = jax.block_until_ready(out)

    ref = rope_reference(x, token_positions, theta=theta, d_k=d_k,
                         max_seq_len=max_seq_len)
    assert out.shape == (B, H, S, d_k)
    assert jnp.allclose(out, ref, atol=1e-5, rtol=1e-5), "mismatch vs reference"

    print("KERNEL_OK")
</pallas_src>

<mosaic_0001>
module attributes {stable_mosaic.version = 11 : i64} {
  func.func @rope_kernel(%arg0: i32, %arg1: i32, %arg2: i32, %arg3: memref<1x4x16x128xf32, #tpu.memory_space<vmem>>, %arg4: memref<1x16x128xf32, #tpu.memory_space<vmem>>, %arg5: memref<1x4x16x128xf32, #tpu.memory_space<vmem>>) attributes {dimension_semantics = [#tpu.dimension_semantics<parallel>, #tpu.dimension_semantics<parallel>, #tpu.dimension_semantics<arbitrary>], iteration_bounds = array<i64: 2, 1, 1>, scalar_prefetch = 0 : i64, scratch_operands = 0 : i64, tpu.core_type = #tpu.core_type<tc>, window_params = [{transform_indices = @transform_0, window_bounds = array<i64: 1, 4, 16, 128>}, {transform_indices = @transform_1, window_bounds = array<i64: 1, 16, 128>}, {transform_indices = @transform_2, window_bounds = array<i64: 1, 4, 16, 128>}]} {
    %c0 = arith.constant 0 : index
    %c0_0 = arith.constant 0 : index
    %c0_1 = arith.constant 0 : index
    %c0_2 = arith.constant 0 : index
    %0 = vector.load %arg3[%c0, %c0_0, %c0_1, %c0_2] : memref<1x4x16x128xf32, #tpu.memory_space<vmem>>, vector<1x4x16x128xf32>
    %1 = vector.shape_cast %0 : vector<1x4x16x128xf32> to vector<4x16x128xf32>
    %c0_3 = arith.constant 0 : index
    %c0_4 = arith.constant 0 : index
    %c0_5 = arith.constant 0 : index
    %2 = vector.load %arg4[%c0_3, %c0_4, %c0_5] : memref<1x16x128xf32, #tpu.memory_space<vmem>>, vector<1x16x128xf32>
    %3 = vector.shape_cast %2 : vector<1x16x128xf32> to vector<16x128xf32>
    %c127_i32 = arith.constant 127 : i32
    %4 = tpu.dynamic_rotate %1 by %c127_i32 dim 2 : vector<4x16x128xf32>, i32 -> vector<4x16x128xf32>
    %c1_i32 = arith.constant 1 : i32
    %5 = tpu.dynamic_rotate %1 by %c1_i32 dim 2 : vector<4x16x128xf32>, i32 -> vector<4x16x128xf32>
    %c127_i32_6 = arith.constant 127 : i32
    %6 = tpu.dynamic_rotate %3 by %c127_i32_6 dim 1 : vector<16x128xf32>, i32 -> vector<16x128xf32>
    %c1_i32_7 = arith.constant 1 : i32
    %7 = tpu.dynamic_rotate %3 by %c1_i32_7 dim 1 : vector<16x128xf32>, i32 -> vector<16x128xf32>
    %8 = tpu.iota {dimensions = array<i32: 1>} : vector<16x128xi32>
    %c1_i32_8 = arith.constant 1 : i32
    %9 = vector.broadcast %c1_i32_8 : i32 to vector<16x128xi32>
    %10 = arith.andi %8, %9 : vector<16x128xi32>
    %c0_i32 = arith.constant 0 : i32
    %11 = vector.broadcast %c0_i32 : i32 to vector<16x128xi32>
    %12 = arith.cmpi eq, %10, %11 : vector<16x128xi32>
    %13 = arith.select %12, %3, %7 : vector<16x128xi1>, vector<16x128xf32>
    %cst = arith.constant 0.000000e+00 : f32
    %14 = vector.broadcast %cst : f32 to vector<16x128xf32>
    %15 = arith.subf %14, %6 : vector<16x128xf32>
    %16 = arith.select %12, %15, %3 : vector<16x128xi1>, vector<16x128xf32>
    %17 = vector.shape_cast %12 : vector<16x128xi1> to vector<1x16x128xi1>
    %18 = vector.broadcast %17 : vector<1x16x128xi1> to vector<4x16x128xi1>
    %19 = arith.select %18, %4, %5 : vector<4x16x128xi1>, vector<4x16x128xf32>
    %20 = vector.shape_cast %13 : vector<16x128xf32> to vector<1x16x128xf32>
    %21 = vector.broadcast %20 : vector<1x16x128xf32> to vector<4x16x128xf32>
    %22 = arith.mulf %1, %21 : vector<4x16x128xf32>
    %23 = vector.shape_cast %16 : vector<16x128xf32> to vector<1x16x128xf32>
    %24 = vector.broadcast %23 : vector<1x16x128xf32> to vector<4x16x128xf32>
    %25 = arith.mulf %19, %24 : vector<4x16x128xf32>
    %26 = arith.addf %22, %25 : vector<4x16x128xf32>
    %c0_9 = arith.constant 0 : index
    %c0_10 = arith.constant 0 : index
    %c0_11 = arith.constant 0 : index
    %c0_12 = arith.constant 0 : index
    %27 = vector.load %arg5[%c0_9, %c0_10, %c0_11, %c0_12] : memref<1x4x16x128xf32, #tpu.memory_space<vmem>>, vector<1x4x16x128xf32>
    %28 = vector.shape_cast %27 : vector<1x4x16x128xf32> to vector<4x16x128xf32>
    %29 = vector.shape_cast %26 : vector<4x16x128xf32> to vector<1x4x16x128xf32>
    tpu.vector_store %arg5[%c0_9, %c0_10, %c0_11, %c0_12], %29 {strides = array<i32>} : memref<1x4x16x128xf32, #tpu.memory_space<vmem>>, vector<1x4x16x128xf32>,
    return
  }
  func.func @transform_0(%arg0: i32, %arg1: i32, %arg2: i32) -> (i32, i32, i32, i32) {
    %c0_i32 = arith.constant 0 : i32
    %c0_i32_0 = arith.constant 0 : i32
    return %arg0, %arg2, %arg1, %c0_i32 : i32, i32, i32, i32
  }
  func.func @transform_1(%arg0: i32, %arg1: i32, %arg2: i32) -> (i32, i32, i32) {
    %c0_i32 = arith.constant 0 : i32
    %c0_i32_0 = arith.constant 0 : i32
    return %arg0, %arg1, %c0_i32 : i32, i32, i32
  }
  func.func @transform_2(%arg0: i32, %arg1: i32, %arg2: i32) -> (i32, i32, i32, i32) {
    %c0_i32 = arith.constant 0 : i32
    %c0_i32_0 = arith.constant 0 : i32
    return %arg0, %arg2, %arg1, %c0_i32 : i32, i32, i32, i32
  }
}

</mosaic_0001>

<llo_original>
// kernel: tpu_custom_call.1
$region0: #{tpu_custom_call.1}
  #allocation0 [shape = 'u32[]', space=smem, size = 0x4, offset = 0x4, fixed_abs, tag = 'smem constant byte address 0x4 - core index']
  #allocation1 [shape = 'u32[72,128]{1,0:T(1,128)}', space=vmem, size = 0x9000, scoped, tag = 'internal scratch']
  %s0 = inlined_call_operand.hbm [shape: f32[2,4,16,128], index: 0, kind: input, shape index: {}]
  %s1 = inlined_call_operand.hbm [shape: f32[2,16,128], index: 1, kind: input, shape index: {}]
  %s2 = inlined_call_operand.hbm [shape: f32[2,4,16,128], index: 2, kind: output, shape index: {}]
  %s3 = sld [smem:[#allocation0]]
  $region49: #{tpu_custom_call.1} parent=0
    _
  %s5 = ssub.s32 1, %s3
  %s6 = scalar_select 0, %s5, %s3
  $region1: #{tpu_custom_call.1} parent=0
    #allocation2 [shape = 'u8[65536]{0}', space=vmem, size = 0x10000, scoped, tag = 'input window, operand 0']
    #allocation3 [shape = 's32[2]{0}', space=sflag, size = 0x8, scoped, tag = 'scoped memory for tpu_custom_call.1']
    #allocation4 [shape = 's32[2]{0}', space=sflag, size = 0x8, scoped, tag = 'scoped memory for tpu_custom_call.1']
    #allocation5 [shape = 'u8[16384]{0}', space=vmem, size = 0x4000, scoped, tag = 'input window, operand 1']
    #allocation6 [shape = 's32[2]{0}', space=sflag, size = 0x8, scoped, tag = 'scoped memory for tpu_custom_call.1']
    #allocation7 [shape = 'u8[65536]{0}', space=vmem, size = 0x10000, scoped, tag = 'output window, operand 0']
    %7 = vsyncpa [#allocation3], 0
    %s8 = scalar_lea.sflag [#allocation3], 1
    %9 = vsyncpa %s8, 0
    %10 = vsyncpa [#allocation6], 0
    %s11 = scalar_lea.sflag [#allocation6], 1
    %12 = vsyncpa %s11, 0
    %13 = vsyncpa [#allocation4], 0
    %s14 = scalar_lea.sflag [#allocation4], 1
    %15 = vsyncpa %s14, 0
    loop: start=0, step=1, limit=4
    $region2: #{tpu_custom_call.1} parent=1 // loop_pre_header
      _
    $region3: #{tpu_custom_call.1} parent=1 // loop_header
      %s17 = sphi 0, %s21
      %p18 = scmp.ge.s32.totalorder %s17, 4
      %s24 = sphi 0, %s43
      %s25 = sphi 0, %s39
      %s26 = sphi 0, %s35
      %s27 = sphi 0, %s24
      %s28 = sphi 0, %s25
      %s29 = sphi 0, %s26
      %s30 = sphi 0, %s27
      %s31 = sphi 0, %s28
      %s32 = sphi 0, %s29
      %s50 = sphi 0, %s52
      %s53 = sphi 0, %s50
      %s54 = sphi 0, %s53
      %s70 = sphi 0, %s54
      %s78 = sphi 0, %s80
      %s81 = sphi 0, %s78
      %s82 = sphi 0, %s81
      %s98 = sphi 0, %s82
      %s108 = sphi 0, %s110
      %s111 = sphi 0, %s108
      %s112 = sphi 0, %s111
      %s128 = sphi 0, %s112
    $region4: #{tpu_custom_call.1} parent=1 // loop_header_branch
      %20 = sbr.rel (%p18) target = $region8
    $region5: #{tpu_custom_call.1} parent=1 // loop_body
      %s22 = ssub.s32 %s17, 1
      %s23 = ssub.s32 %s17, 2
      %s33 = sadd.s32 1, %s26
      %p34 = scmp.ge.s32.totalorder %s33, 1
      %s35 = scalar_select %p34, 0, %s33
      %s36 = sadd.s32 1, %s25
      %s37 = scalar_select %p34, %s36, %s25
      %p38 = scmp.ge.s32.totalorder %s37, 1
      %s39 = scalar_select %p38, 0, %s37
      %s40 = sadd.s32 1, %s24
      %s41 = scalar_select %p38, %s40, %s24
      %p42 = scmp.ge.s32.totalorder %s41, 2
      %s43 = scalar_select %p42, 0, %s41
      %s44 = ssub.s32 %s24, %s43
      %s45 = ssub.s32 %s26, %s35
      %s46 = sor.u32 %s44, %s45
      %s47 = ssub.s32 %s25, %s39
      %s48 = sor.u32 %s46, %s47
      %p49 = scmp.eq.s32.totalorder %s48, 0
      %s51 = sadd.s32 %s50, 1
      %s52 = scalar_select %p49, %s50, %s51
      %p55 = pneg %p49
      %p56 = scmp.eq.s32.totalorder %s17, 1
      %p57 = por %p55, %p56
      %p58 = scmp.ne.s32.totalorder %s50, %s53
      %p59 = scmp.eq.s32.totalorder %s17, 0
      %p60 = por %p58, %p59
      %p61 = scmp.ne.s32.totalorder %s50, %s53
      %p62 = scmp.eq.s32.totalorder %s22, 1
      %p63 = por %p61, %p62
      %p64 = scmp.ne.s32.totalorder %s53, %s54
      %p65 = scmp.eq.s32.totalorder %s22, 0
      %p66 = por %p64, %p65
      %p67 = scmp.ne.s32.totalorder %s53, %s54
      %p68 = scmp.eq.s32.totalorder %s23, 1
      %p69 = por %p67, %p68
      %p71 = scmp.ne.s32.totalorder %s54, %s70
      %p72 = scmp.eq.s32.totalorder %s23, 0
      %p73 = por %p71, %p72
      %s74 = ssub.s32 %s24, %s43
      %s75 = ssub.s32 %s25, %s39
      %s76 = sor.u32 %s74, %s75
      %p77 = scmp.eq.s32.totalorder %s76, 0
      %s79 = sadd.s32 %s78, 1
      %s80 = scalar_select %p77, %s78, %s79
      %p83 = pneg %p77
      %p84 = scmp.eq.s32.totalorder %s17, 1
      %p85 = por %p83, %p84
      %p86 = scmp.ne.s32.totalorder %s78, %s81
      %p87 = scmp.eq.s32.totalorder %s17, 0
      %p88 = por %p86, %p87
      %p89 = scmp.ne.s32.totalorder %s78, %s81
      %p90 = scmp.eq.s32.totalorder %s22, 1
      %p91 = por %p89, %p90
      %p92 = scmp.ne.s32.totalorder %s81, %s82
      %p93 = scmp.eq.s32.totalorder %s22, 0
      %p94 = por %p92, %p93
      %p95 = scmp.ne.s32.totalorder %s81, %s82
      %p96 = scmp.eq.s32.totalorder %s23, 1
      %p97 = por %p95, %p96
      %p99 = scmp.ne.s32.totalorder %s82, %s98
      %p100 = scmp.eq.s32.totalorder %s23, 0
      %p101 = por %p99, %p100
      %s102 = ssub.s32 %s24, %s43
      %s103 = ssub.s32 %s26, %s35
      %s104 = sor.u32 %s102, %s103
      %s105 = ssub.s32 %s25, %s39
      %s106 = sor.u32 %s104, %s105
      %p107 = scmp.eq.s32.totalorder %s106, 0
      %s109 = sadd.s32 %s108, 1
      %s110 = scalar_select %p107, %s108, %s109
      %p113 = pneg %p107
      %p114 = scmp.eq.s32.totalorder %s17, 1
      %p115 = por %p113, %p114
      %p116 = scmp.ne.s32.totalorder %s108, %s111
      %p117 = scmp.eq.s32.totalorder %s17, 0
      %p118 = por %p116, %p117
      %p119 = scmp.ne.s32.totalorder %s108, %s111
      %p120 = scmp.eq.s32.totalorder %s22, 1
      %p121 = por %p119, %p120
      %p122 = scmp.ne.s32.totalorder %s111, %s112
      %p123 = scmp.eq.s32.totalorder %s22, 0
      %p124 = por %p122, %p123
      %p125 = scmp.ne.s32.totalorder %s111, %s112
      %p126 = scmp.eq.s32.totalorder %s23, 1
      %p127 = por %p125, %p126
      %p129 = scmp.ne.s32.totalorder %s112, %s128
      %p130 = scmp.eq.s32.totalorder %s23, 0
      %p131 = por %p129, %p130
      %p132 = scmp.le.s32.totalorder 1, %s17
      %p133 = scmp.lt.s32.totalorder %s17, 3
      %p134 = pnand %p132, %p133
      %p135 = pneg %p134
      // Predicated region
      $region9: #{tpu_custom_call.1} parent=5 // pred_check
        _
      $region10: #{tpu_custom_call.1} parent=5 // pred_check_branch
        %137 = sbr.rel (%p134) target = $region12
      $region11: #{tpu_custom_call.1} parent=5 // pred_region
        %s138 = ssub.s32 %s17, 1
      $region12: #{tpu_custom_call.1} parent=5 // pred_fallthru
        _
      %p139 = scmp.lt.s32.totalorder %s17, 2
      // Predicated region
      $region13: #{tpu_custom_call.1} parent=5 // pred_check
        %p140 = pneg %p139
      $region14: #{tpu_custom_call.1} parent=5 // pred_check_branch
        %142 = sbr.rel (%p140) target = $region16
      $region15: #{tpu_custom_call.1} parent=5 // pred_region
        // Predicated region
        $region17: #{tpu_custom_call.1} parent=15 // pred_check
          %p143 = pneg %p60
        $region18: #{tpu_custom_call.1} parent=15 // pred_check_branch
          %145 = sbr.rel (%p143) target = $region20
        $region19: #{tpu_custom_call.1} parent=15 // pred_region
          %s146 = sand.u32 %s50, 1
          %s147 = scalar_lea.sflag [#allocation3], %s146
          %s148 = sand.u32 %s50, 1
          %s149 = smul.addr %s148, 64
          %s150 = scalar_lea.vmem [#allocation2], %s149
          %s151 = smul.u32 4, %s26
          %s152 = smul.u32 2, %s25
          %154 = vsyncadd %s147, 0
          %s155 = smul.addr %s151, 2
          %s156 = sadd.s32 %s152, %s155
          %s157 = smul.addr %s24, 8
          %s158 = sadd.s32 %s156, %s157
          %s159 = smul.addr %s158, 8
          %s160 = scalar_lea.hbm %s0, %s159
          %s161 = sshll.u32 %s160, 4
          %s162 = int_to_ptr.hbm [resolvable:$true] %s161
          %s163 = sshll.u32 %s150, 4
          %s164 = int_to_ptr.vmem [resolvable:$true] %s163
          %169 = dma.hbm_to_vmem [thread:$0]  %s162, 1024, %s164, %s147, 128, 128, 8
        $region20: #{tpu_custom_call.1} parent=15 // pred_fallthru
          _
        // Predicated region
        $region21: #{tpu_custom_call.1} parent=15 // pred_check
          %p170 = pneg %p88
        $region22: #{tpu_custom_call.1} parent=15 // pred_check_branch
          %172 = sbr.rel (%p170) target = $region24
        $region23: #{tpu_custom_call.1} parent=15 // pred_region
          %s173 = sand.u32 %s78, 1
          %s174 = scalar_lea.sflag [#allocation6], %s173
          %s175 = sand.u32 %s78, 1
          %s176 = smul.addr %s175, 16
          %s177 = scalar_lea.vmem [#allocation5], %s176
          %s178 = smul.u32 2, %s25
          %180 = vsyncadd %s174, 0
          %s181 = smul.addr %s24, 2
          %s182 = sadd.s32 %s178, %s181
          %s183 = smul.addr %s182, 8
          %s184 = scalar_lea.hbm %s1, %s183
          %s185 = sshll.u32 %s184, 4
          %s186 = int_to_ptr.hbm [resolvable:$true] %s185
          %s187 = sshll.u32 %s177, 4
          %s188 = int_to_ptr.vmem [resolvable:$true] %s187
          %193 = dma.hbm_to_vmem [thread:$0]  %s186, 256, %s188, %s174, 128, 128, 8
        $region24: #{tpu_custom_call.1} parent=15 // pred_fallthru
          _
      $region16: #{tpu_custom_call.1} parent=5 // pred_fallthru
        _
      %p194 = scmp.le.s32.totalorder 1, %s17
      %p195 = scmp.lt.s32.totalorder %s17, 3
      %p196 = pnand %p194, %p195
      %p197 = pneg %p196
      // Predicated region
      $region25: #{tpu_custom_call.1} parent=5 // pred_check
        _
      $region26: #{tpu_custom_call.1} parent=5 // pred_check_branch
        %199 = sbr.rel (%p196) target = $region28
      $region27: #{tpu_custom_call.1} parent=5 // pred_region
        %s200 = ssub.s32 %s17, 1
        %s201 = sand.u32 %s53, 1
        %s202 = scalar_lea.sflag [#allocation3], %s201
        %s203 = sand.u32 %s53, 1
        %s204 = smul.addr %s203, 64
        %s205 = scalar_lea.vmem [#allocation2], %s204
        // Predicated region
        $region29: #{tpu_custom_call.1} parent=27 // pred_check
          %p206 = pneg %p66
        $region30: #{tpu_custom_call.1} parent=27 // pred_check_branch
          %208 = sbr.rel (%p206) target = $region32
        $region31: #{tpu_custom_call.1} parent=27 // pred_region
          %210 = dma.done %s202, 1024
        $region32: #{tpu_custom_call.1} parent=27 // pred_fallthru
          _
        %s211 = sand.u32 %s81, 1
        %s212 = scalar_lea.sflag [#allocation6], %s211
        %s213 = sand.u32 %s81, 1
        %s214 = smul.addr %s213, 16
        %s215 = scalar_lea.vmem [#allocation5], %s214
        // Predicated region
        $region33: #{tpu_custom_call.1} parent=27 // pred_check
          %p216 = pneg %p94
        $region34: #{tpu_custom_call.1} parent=27 // pred_check_branch
          %218 = sbr.rel (%p216) target = $region36
        $region35: #{tpu_custom_call.1} parent=27 // pred_region
          %220 = dma.done %s212, 256
        $region36: #{tpu_custom_call.1} parent=27 // pred_fallthru
          _
        %s221 = sand.u32 %s53, 1
        %s222 = scalar_lea.sflag [#allocation3], %s221
        %s223 = sand.u32 %s53, 1
        %s224 = smul.addr %s223, 64
        %s225 = scalar_lea.vmem [#allocation2], %s224
        %p226 = pneg %p66
        %p227 = pneg %p63
        %s228 = sand.u32 %s81, 1
        %s229 = scalar_lea.sflag [#allocation6], %s228
        %s230 = sand.u32 %s81, 1
        %s231 = smul.addr %s230, 16
        %s232 = scalar_lea.vmem [#allocation5], %s231
        %p233 = pneg %p94
        %p234 = pneg %p91
        %p235 = pneg %p124
        %p236 = pneg %p121
        %s237 = sand.u32 %s111, 1
        %s238 = scalar_lea.sflag [#allocation4], %s237
        %s239 = sand.u32 %s111, 1
        %s240 = smul.addr %s239, 64
        %s241 = scalar_lea.vmem [#allocation7], %s240
        %s242 = smul.u32 4, %s29
        %s243 = smul.u32 2, %s28
        %s244 = smul.u32 2, %s28
        %s245 = smul.u32 4, %s29
        %s246 = smul.u32 2, %s28
        %v247 = vld [vmem:[%s205] sm:$0xff]
        %v248 = vld [vmem:[%s205 + $0x8] sm:$0xff]
        %v249 = vld [vmem:[%s205 + $0x10] sm:$0xff]
        %v250 = vld [vmem:[%s205 + $0x18] sm:$0xff]
        %v251 = vld [vmem:[%s205 + $0x20] sm:$0xff]
        %v252 = vld [vmem:[%s205 + $0x28] sm:$0xff]
        %v253 = vld [vmem:[%s205 + $0x30] sm:$0xff]
        %v254 = vld [vmem:[%s205 + $0x38] sm:$0xff]
        %v255 = vld [vmem:[%s215] sm:$0xff]
        %v256 = vld [vmem:[%s215 + $0x8] sm:$0xff]
        %257 = vrot.lane.b32.xlu0 %v247, 127
        %v258 = vpop.permute.xlu0 %257
        %259 = vrot.lane.b32.xlu0 %v248, 127
        %v260 = vpop.permute.xlu0 %259
        %261 = vrot.lane.b32.xlu0 %v249, 127
        %v262 = vpop.permute.xlu0 %261
        %263 = vrot.lane.b32.xlu0 %v250, 127
        %v264 = vpop.permute.xlu0 %263
        %265 = vrot.lane.b32.xlu0 %v251, 127
        %v266 = vpop.permute.xlu0 %265
        %267 = vrot.lane.b32.xlu0 %v252, 127
        %v268 = vpop.permute.xlu0 %267
        %269 = vrot.lane.b32.xlu0 %v253, 127
        %v270 = vpop.permute.xlu0 %269
        %271 = vrot.lane.b32.xlu0 %v254, 127
        %v272 = vpop.permute.xlu0 %271
        %273 = vrot.lane.b32.xlu0 %v247, 1
        %v274 = vpop.permute.xlu0 %273
        %275 = vrot.lane.b32.xlu0 %v248, 1
        %v276 = vpop.permute.xlu0 %275
        %277 = vrot.lane.b32.xlu0 %v249, 1
        %v278 = vpop.permute.xlu0 %277
        %279 = vrot.lane.b32.xlu0 %v250, 1
        %v280 = vpop.permute.xlu0 %279
        %281 = vrot.lane.b32.xlu0 %v251, 1
        %v282 = vpop.permute.xlu0 %281
        %283 = vrot.lane.b32.xlu0 %v252, 1
        %v284 = vpop.permute.xlu0 %283
        %285 = vrot.lane.b32.xlu0 %v253, 1
        %v286 = vpop.permute.xlu0 %285
        %287 = vrot.lane.b32.xlu0 %v254, 1
        %v288 = vpop.permute.xlu0 %287
        %289 = vrot.lane.b32.xlu0 %v255, 127
        %v290 = vpop.permute.xlu0 %289
        %291 = vrot.lane.b32.xlu0 %v256, 127
        %v292 = vpop.permute.xlu0 %291
        %293 = vrot.lane.b32.xlu0 %v255, 1
        %v294 = vpop.permute.xlu0 %293
        %295 = vrot.lane.b32.xlu0 %v256, 1
        %v296 = vpop.permute.xlu0 %295
        %v297 = vlaneseq
        %v298 = vand.u32 %v297, 127
        %v299 = vand.u32 %v298, 1
        %vm300 = vcmp.eq.s32.totalorder %v299, 0
        %v301 = vsel %vm300, %v255, %v294
        %v302 = vsel %vm300, %v256, %v296
        %v303 = vsub.f32 0.0, %v290
        %v304 = vsub.f32 0.0, %v292
        %v305 = vsel %vm300, %v303, %v255
        %v306 = vsel %vm300, %v304, %v256
        %v307 = vsel %vm300, 1, 0
        %vm308 = vcmp.eq.s32.totalorder %v307, 1
        %v309 = vsel %vm308, %v258, %v274
        %v310 = vsel %vm308, %v260, %v276
        %v311 = vsel %vm308, %v262, %v278
        %v312 = vsel %vm308, %v264, %v280
        %v313 = vsel %vm308, %v266, %v282
        %v314 = vsel %vm308, %v268, %v284
        %v315 = vsel %vm308, %v270, %v286
        %v316 = vsel %vm308, %v272, %v288
        %v317 = vmul.f32 %v247, %v301
        %v318 = vmul.f32 %v248, %v302
        %v319 = vmul.f32 %v249, %v301
        %v320 = vmul.f32 %v250, %v302
        %v321 = vmul.f32 %v251, %v301
        %v322 = vmul.f32 %v252, %v302
        %v323 = vmul.f32 %v253, %v301
        %v324 = vmul.f32 %v254, %v302
        %v325 = vmul.f32 %v309, %v305
        %v326 = vmul.f32 %v310, %v306
        %v327 = vmul.f32 %v311, %v305
        %v328 = vmul.f32 %v312, %v306
        %v329 = vmul.f32 %v313, %v305
        %v330 = vmul.f32 %v314, %v306
        %v331 = vmul.f32 %v315, %v305
        %v332 = vmul.f32 %v316, %v306
        %v333 = vadd.f32 %v317, %v325
        %v334 = vadd.f32 %v318, %v326
        %v335 = vadd.f32 %v319, %v327
        %v336 = vadd.f32 %v320, %v328
        %v337 = vadd.f32 %v321, %v329
        %v338 = vadd.f32 %v322, %v330
        %v339 = vadd.f32 %v323, %v331
        %v340 = vadd.f32 %v324, %v332
        %341 = vst [vmem:[%s241] sm:$0xff] %v333
        %342 = vst [vmem:[%s241 + $0x8] sm:$0xff] %v334
        %343 = vst [vmem:[%s241 + $0x10] sm:$0xff] %v335
        %344 = vst [vmem:[%s241 + $0x18] sm:$0xff] %v336
        %345 = vst [vmem:[%s241 + $0x20] sm:$0xff] %v337
        %346 = vst [vmem:[%s241 + $0x28] sm:$0xff] %v338
        %347 = vst [vmem:[%s241 + $0x30] sm:$0xff] %v339
        %348 = vst [vmem:[%s241 + $0x38] sm:$0xff] %v340
        %s349 = sand.u32 %s111, 1
        %s350 = scalar_lea.sflag [#allocation4], %s349
        %s351 = sand.u32 %s111, 1
        %s352 = smul.addr %s351, 64
        %s353 = scalar_lea.vmem [#allocation7], %s352
        // Predicated region
        $region37: #{tpu_custom_call.1} parent=27 // pred_check
          %p354 = pneg %p121
        $region38: #{tpu_custom_call.1} parent=27 // pred_check_branch
          %356 = sbr.rel (%p354) target = $region40
        $region39: #{tpu_custom_call.1} parent=27 // pred_region
          %s357 = smul.u32 4, %s29
          %s358 = smul.u32 2, %s28
          %360 = vsyncadd %s350, 0
          %s361 = smul.addr %s357, 2
          %s362 = sadd.s32 %s358, %s361
          %s363 = smul.addr %s27, 8
          %s364 = sadd.s32 %s362, %s363
          %s365 = smul.addr %s364, 8
          %s366 = scalar_lea.hbm %s2, %s365
          %s367 = sshll.u32 %s353, 4
          %s368 = int_to_ptr.vmem [resolvable:$true] %s367
          %s369 = sshll.u32 %s366, 4
          %s370 = int_to_ptr.hbm [resolvable:$true] %s369
          %375 = dma.vmem_to_hbm [thread:$0]  %s368, 1024, %s370, %s350, 128, 128, 8
        $region40: #{tpu_custom_call.1} parent=27 // pred_fallthru
          _
      $region28: #{tpu_custom_call.1} parent=5 // pred_fallthru
        _
      %p376 = scmp.le.s32.totalorder 2, %s17
      // Predicated region
      $region41: #{tpu_custom_call.1} parent=5 // pred_check
        %p377 = pneg %p376
      $region42: #{tpu_custom_call.1} parent=5 // pred_check_branch
        %379 = sbr.rel (%p377) target = $region44
      $region43: #{tpu_custom_call.1} parent=5 // pred_region
        %s380 = ssub.s32 %s17, 2
        // Predicated region
        $region45: #{tpu_custom_call.1} parent=43 // pred_check
          %p381 = pneg %p127
        $region46: #{tpu_custom_call.1} parent=43 // pred_check_branch
          %383 = sbr.rel (%p381) target = $region48
        $region47: #{tpu_custom_call.1} parent=43 // pred_region
          %s384 = sand.u32 %s112, 1
          %s385 = scalar_lea.sflag [#allocation4], %s384
          %s386 = sand.u32 %s112, 1
          %s387 = smul.addr %s386, 64
          %s388 = scalar_lea.vmem [#allocation7], %s387
          %390 = dma.done %s385, 1024
        $region48: #{tpu_custom_call.1} parent=43 // pred_fallthru
          _
      $region44: #{tpu_custom_call.1} parent=5 // pred_fallthru
        _
    $region6: #{tpu_custom_call.1} parent=1 // loop_footer
      %s21 = sadd.s32 1, %s17
    $region7: #{tpu_custom_call.1} parent=1 // loop_footer_branch
      %16 = sbr.rel target = $region3
    $region8: #{tpu_custom_call.1} parent=1 // loop_exit
      _
    %391 = vsyncpa [#allocation3], 1
    %s392 = scalar_lea.sflag [#allocation3], 1
    %393 = vsyncpa %s392, 1
    %394 = vsyncpa [#allocation6], 1
    %s395 = scalar_lea.sflag [#allocation6], 1
    %396 = vsyncpa %s395, 1
    %397 = vsyncpa [#allocation4], 1
    %s398 = scalar_lea.sflag [#allocation4], 1
    %399 = vsyncpa %s398, 1

</llo_original>
